<compile_context>
chip_gen: v5e
topology: v5e:2x2
jax: 0.10.0
libtpu: 0.0.40
codegen_flags: <defaults>
</compile_context>

<pallas_src>
import math
import numpy as np
import jax
import jax.numpy as jnp
from jax import lax
from jax.experimental import pallas as pl
from jax.experimental.pallas import tpu as pltpu

# ----------------------------- config ---------------------------------------
B          = 2     # batch
SQ         = 8     # query sequence length (input_ids_1)
SK         = 8     # key/value sequence length (input_ids)
HIDDEN     = 32    # hidden_size
NUM_HEADS  = 4     # num_attention_heads
HEAD_DIM   = HIDDEN // NUM_HEADS
INTER      = 64    # intermediate_size
LN_EPS     = 1e-12
DTYPE      = jnp.float32

ROWS_Q = B * SQ                 # 16 flattened query rows
ROWS_K = B * SK                 # 16 flattened key rows
ROWS_S = ROWS_Q * NUM_HEADS     # 64 score rows, head-major: row = h*16 + b*SQ + q

# ---- packed parameter slab layout: [PAR_ROWS, 128] f32, built ONCE ----------
PAR_ROWS, PAR_LANES = 176, 128
# rows   0: 32  lanes 0:96   -> wqkv = [wq*scale | wk | wv]
# rows  32: 64  lanes 0:32   -> wd
# rows  64: 96  lanes 0:64   -> wffn
# rows  96:160  lanes 0:32   -> wffo
R_BQKV, R_BD, R_LN1G, R_LN1B, R_BFFN, R_BFFO, R_LN2G, R_LN2B, R_HM = (
    160, 161, 162, 163, 164, 165, 166, 167, 168)   # R_HM..R_HM+3 = head masks

# ---- packed activation slab layout: [96, 32] f32, built per call ------------
ACT_ROWS = 2 * ROWS_Q + ROWS_S   # 96
# rows  0:16 -> x1_flat, rows 16:32 -> x_flat, rows 32:96 lanes 0:16 -> bias


def _gelu_erf(x):
    # original BERT gelu: x * 0.5 * (1 + erf(x / sqrt(2)))
    return x * 0.5 * (1.0 + lax.erf(x / math.sqrt(2.0)))


def _layer_norm(x, gamma, beta, eps):
    mean = jnp.mean(x, axis=-1, keepdims=True)
    var = jnp.mean((x - mean) ** 2, axis=-1, keepdims=True)
    return (x - mean) * lax.rsqrt(var + eps) * gamma + beta


# ----------------------------- kernel ----------------------------------------
def trm_coatt_kernel(act_ref, par_ref, out_ref):
    # ---- unpack activation slab (static, aligned slices) ----
    xx   = act_ref[0:2 * ROWS_Q, :]                       # [32,32] stacked [x1 ; x]
    x1   = act_ref[0:ROWS_Q, :]                           # [16,32]
    bias = act_ref[2 * ROWS_Q:ACT_ROWS, 0:ROWS_K]         # [64,16] additive attn bias

    # ---- unpack parameter slab ----
    wqkv = par_ref[0:32, 0:3 * HIDDEN]                    # [32,96]  (wq pre-scaled)
    wd   = par_ref[32:64, 0:HIDDEN]                       # [32,32]
    wffn = par_ref[64:96, 0:INTER]                        # [32,64]
    wffo = par_ref[96:160, 0:HIDDEN]                      # [64,32]
    bqkv = par_ref[R_BQKV:R_BQKV + 1, 0:3 * HIDDEN]       # [1,96] (bq pre-scaled)
    bd    = par_ref[R_BD:R_BD + 1,     0:HIDDEN]
    ln1_g = par_ref[R_LN1G:R_LN1G + 1, 0:HIDDEN]
    ln1_b = par_ref[R_LN1B:R_LN1B + 1, 0:HIDDEN]
    bffn  = par_ref[R_BFFN:R_BFFN + 1, 0:INTER]
    bffo  = par_ref[R_BFFO:R_BFFO + 1, 0:HIDDEN]
    ln2_g = par_ref[R_LN2G:R_LN2G + 1, 0:HIDDEN]
    ln2_b = par_ref[R_LN2B:R_LN2B + 1, 0:HIDDEN]
    hm    = par_ref[R_HM:R_HM + NUM_HEADS, 0:HIDDEN]      # [4,32] head channel masks

    # ---- fused Q / K / V projection: one MXU push ----
    qkv = jnp.dot(xx, wqkv, preferred_element_type=jnp.float32) + bqkv  # [32,96]
    q = qkv[0:ROWS_Q, 0:HIDDEN]                     # x1 @ wq (already 1/sqrt(d) scaled)
    k = qkv[ROWS_Q:2 * ROWS_Q, HIDDEN:2 * HIDDEN]   # x  @ wk
    v = qkv[ROWS_Q:2 * ROWS_Q, 2 * HIDDEN:3 * HIDDEN]   # x @ wv

    # ---- per-head masked query replication (head-major, sublane-aligned) ----
    q_big = jnp.concatenate(
        [q * hm[h:h + 1, :] for h in range(NUM_HEADS)], axis=0)         # [64,32]

    # ---- all-head / all-batch scores in one matmul, then precomputed bias ----
    scores = lax.dot_general(q_big, k, (((1,), (1,)), ((), ())),
                             preferred_element_type=jnp.float32)        # [64,16]
    scores = scores + bias

    # ---- softmax over keys (max-stabilized, exact reciprocal) ----
    scores = scores - jnp.max(scores, axis=-1, keepdims=True)
    p = jnp.exp(scores)
    probs = p / jnp.sum(p, axis=-1, keepdims=True)

    # ---- context: one matmul, then 4 aligned sublane slices masked per head ----
    ctx_all = jnp.dot(probs, v, preferred_element_type=jnp.float32)     # [64,32]
    ctx = (ctx_all[0:16, :]  * hm[0:1, :] + ctx_all[16:32, :] * hm[1:2, :] +
           ctx_all[32:48, :] * hm[2:3, :] + ctx_all[48:64, :] * hm[3:4, :])  # [16,32]

    # ---- dense projection + residual + LayerNorm ----
    proj = jnp.dot(ctx, wd, preferred_element_type=jnp.float32) + bd
    ln1 = _layer_norm(x1 + proj, ln1_g, ln1_b, LN_EPS)

    # ---- FFN (erf-GELU, parity with the PyTorch module) + residual + LN ----
    ffn = _gelu_erf(jnp.dot(ln1, wffn, preferred_element_type=jnp.float32) + bffn)
    ffo = jnp.dot(ffn, wffo, preferred_element_type=jnp.float32) + bffo

    out_ref[...] = _layer_norm(ffo + ln1, ln2_g, ln2_b, LN_EPS).astype(out_ref.dtype)


# --------------------- one-time (weight-load-time) packing --------------------
def pack_params(params):
    """Build the [176,128] parameter slab once (host-side numpy); NOT per call."""
    (wq, bq, wk, bk, wv, bv, wd, bd, ln1_g, ln1_b,
     wffn, bffn, wffo, bffo, ln2_g, ln2_b) = [np.asarray(p, np.float32) for p in params]
    scale = 1.0 / math.sqrt(HEAD_DIM)          # bake score scale into Q projection
    P = np.zeros((PAR_ROWS, PAR_LANES), np.float32)
    P[0:32, 0:32]    = wq * scale
    P[0:32, 32:64]   = wk
    P[0:32, 64:96]   = wv
    P[32:64, 0:32]   = wd
    P[64:96, 0:64]   = wffn
    P[96:160, 0:32]  = wffo
    P[R_BQKV, 0:32]  = bq[0] * scale
    P[R_BQKV, 32:64] = bk[0]
    P[R_BQKV, 64:96] = bv[0]
    P[R_BD,   0:32]  = bd[0]
    P[R_LN1G, 0:32]  = ln1_g[0]
    P[R_LN1B, 0:32]  = ln1_b[0]
    P[R_BFFN, 0:64]  = bffn[0]
    P[R_BFFO, 0:32]  = bffo[0]
    P[R_LN2G, 0:32]  = ln2_g[0]
    P[R_LN2B, 0:32]  = ln2_b[0]
    for h in range(NUM_HEADS):                 # head channel selector masks
        P[R_HM + h, h * HEAD_DIM:(h + 1) * HEAD_DIM] = 1.0
    return jnp.asarray(P)


def _build_cross_batch_mask():
    # rows: (head, batch, query) head-major; cols: (batch, key)
    rows = np.arange(ROWS_S)
    cols = np.arange(ROWS_K)
    row_b = (rows % (B * SQ)) // SQ
    col_b = cols // SK
    return np.where(row_b[:, None] == col_b[None, :], 0.0, -1e9).astype(np.float32)


_CROSS_BATCH_MASK = _build_cross_batch_mask()   # constant, folded under jit


# ----------------------------- wrapper ----------------------------------------
def trm_coatt(x, x1, mask, packed_params):
    """x: [B, SK, H] (input_ids), x1: [B, SQ, H] (input_ids_1), mask: [B, SK]."""
    x1f = x1.reshape(ROWS_Q, HIDDEN)
    xf  = x.reshape(ROWS_K, HIDDEN)
    # additive attention bias (BERT -10000 key mask + cross-batch block mask)
    ext = ((1.0 - mask) * -10000.0).reshape(1, ROWS_K)
    bias = ext + _CROSS_BATCH_MASK                                   # [64,16]
    bias = jnp.pad(bias, ((0, 0), (0, HIDDEN - ROWS_K)))             # [64,32]
    act = jnp.concatenate([x1f, xf, bias], axis=0)                   # [96,32]

    def full_spec(shape):
        return pl.BlockSpec(shape, lambda i, _n=len(shape): (0,) * _n)

    out_flat = pl.pallas_call(
        trm_coatt_kernel,
        out_shape=jax.ShapeDtypeStruct((ROWS_Q, HIDDEN), DTYPE),
        grid=(1,),                                   # whole problem in one step
        in_specs=[
            full_spec((ACT_ROWS, HIDDEN)),           # packed activations + bias
            full_spec((PAR_ROWS, PAR_LANES)),        # packed parameters
        ],
        out_specs=full_spec((ROWS_Q, HIDDEN)),
        compiler_params=pltpu.CompilerParams(
            dimension_semantics=("arbitrary",)),
    )(act, packed_params)

    return out_flat.reshape(B, SQ, HIDDEN)


# ----------------------------- pure-JAX reference ------------------------------
def trm_coatt_ref(x, x1, mask, params):
    (wq, bq, wk, bk, wv, bv, wd, bd, ln1_g, ln1_b,
     wffn, bffn, wffo, bffo, ln2_g, ln2_b) = params
    ext = (1.0 - mask)[:, None, None, :] * -10000.0                 # [B,1,1,SK]
    q = x1 @ wq + bq
    k = x @ wk + bk
    v = x @ wv + bv

    def split(t, s):
        return t.reshape(B, s, NUM_HEADS, HEAD_DIM).transpose(0, 2, 1, 3)

    qh, kh, vh = split(q, SQ), split(k, SK), split(v, SK)
    scores = jnp.einsum('bhqd,bhkd->bhqk', qh, kh) / math.sqrt(HEAD_DIM) + ext
    probs = jax.nn.softmax(scores, axis=-1)
    ctx = jnp.einsum('bhqk,bhkd->bhqd', probs, vh)
    ctx = ctx.transpose(0, 2, 1, 3).reshape(B, SQ, HIDDEN)
    proj = ctx @ wd + bd
    ln1 = _layer_norm(x1 + proj, ln1_g, ln1_b, LN_EPS)
    ffn = _gelu_erf(ln1 @ wffn + bffn)
    ffo = ffn @ wffo + bffo
    return _layer_norm(ffo + ln1, ln2_g, ln2_b, LN_EPS)


# ----------------------------- main --------------------------------------------
if __name__ == "__main__":
    key = jax.random.PRNGKey(0)
    ks = jax.random.split(key, 16)

    def rnd(k, shape, scale=0.05):
        return (scale * jax.random.normal(k, shape)).astype(DTYPE)

    # parameters (weights stored as [in, out], biases as [1, out])
    wq = rnd(ks[0], (HIDDEN, HIDDEN)); bq = rnd(ks[1], (1, HIDDEN))
    wk = rnd(ks[2], (HIDDEN, HIDDEN)); bk = rnd(ks[3], (1, HIDDEN))
    wv = rnd(ks[4], (HIDDEN, HIDDEN)); bv = rnd(ks[5], (1, HIDDEN))
    wd = rnd(ks[6], (HIDDEN, HIDDEN)); bd = rnd(ks[7], (1, HIDDEN))
    ln1_g = jnp.ones((1, HIDDEN), DTYPE); ln1_b = jnp.zeros((1, HIDDEN), DTYPE)
    wffn = rnd(ks[8], (HIDDEN, INTER)); bffn = rnd(ks[9], (1, INTER))
    wffo = rnd(ks[10], (INTER, HIDDEN)); bffo = rnd(ks[11], (1, HIDDEN))
    ln2_g = jnp.ones((1, HIDDEN), DTYPE); ln2_b = jnp.zeros((1, HIDDEN), DTYPE)

    params = (wq, bq, wk, bk, wv, bv, wd, bd, ln1_g, ln1_b,
              wffn, bffn, wffo, bffo, ln2_g, ln2_b)

    # inputs
    x  = rnd(ks[12], (B, SK, HIDDEN), scale=1.0)   # input_ids  (key/value source)
    x1 = rnd(ks[13], (B, SQ, HIDDEN), scale=1.0)   # input_ids_1 (query source)
    # attention mask over key positions: 1 = keep, 0 = masked (last 2 keys masked)
    mask = jnp.concatenate(
        [jnp.ones((B, SK - 2), DTYPE), jnp.zeros((B, 2), DTYPE)], axis=-1)

    # one-time parameter packing (weight-load time), NOT on the per-call path
    packed = pack_params(params)

    fwd = jax.jit(trm_coatt)
    out = jax.block_until_ready(fwd(x, x1, mask, packed))

    ref = trm_coatt_ref(x, x1, mask, params)
    np.testing.assert_allclose(np.asarray(out), np.asarray(ref), rtol=1e-5, atol=1e-5)

    print("KERNEL_OK")
</pallas_src>

<mosaic_0001>
module attributes {stable_mosaic.version = 11 : i64} {
  func.func @trm_coatt_kernel(%arg0: i32, %arg1: memref<96x32xf32, #tpu.memory_space<vmem>>, %arg2: memref<176x128xf32, #tpu.memory_space<vmem>>, %arg3: memref<16x32xf32, #tpu.memory_space<vmem>>) attributes {dimension_semantics = [#tpu.dimension_semantics<arbitrary>], iteration_bounds = array<i64: 1>, scalar_prefetch = 0 : i64, scratch_operands = 0 : i64, tpu.core_type = #tpu.core_type<tc>, window_params = [{pipeline_mode = #tpu.pipeline_mode<synchronous>, transform_indices = @transform_0, window_bounds = array<i64: 96, 32>}, {pipeline_mode = #tpu.pipeline_mode<synchronous>, transform_indices = @transform_1, window_bounds = array<i64: 176, 128>}, {pipeline_mode = #tpu.pipeline_mode<synchronous>, transform_indices = @transform_2, window_bounds = array<i64: 16, 32>}]} {
    %c0 = arith.constant 0 : index
    %c0_0 = arith.constant 0 : index
    %0 = vector.load %arg1[%c0, %c0_0] : memref<96x32xf32, #tpu.memory_space<vmem>>, vector<32x32xf32>
    %c0_1 = arith.constant 0 : index
    %c0_2 = arith.constant 0 : index
    %1 = vector.load %arg1[%c0_1, %c0_2] : memref<96x32xf32, #tpu.memory_space<vmem>>, vector<16x32xf32>
    %c32 = arith.constant 32 : index
    %c0_3 = arith.constant 0 : index
    %2 = vector.load %arg1[%c32, %c0_3] : memref<96x32xf32, #tpu.memory_space<vmem>>, vector<64x16xf32>
    %c0_4 = arith.constant 0 : index
    %c0_5 = arith.constant 0 : index
    %3 = vector.load %arg2[%c0_4, %c0_5] : memref<176x128xf32, #tpu.memory_space<vmem>>, vector<32x96xf32>
    %c32_6 = arith.constant 32 : index
    %c0_7 = arith.constant 0 : index
    %4 = vector.load %arg2[%c32_6, %c0_7] : memref<176x128xf32, #tpu.memory_space<vmem>>, vector<32x32xf32>
    %c64 = arith.constant 64 : index
    %c0_8 = arith.constant 0 : index
    %5 = vector.load %arg2[%c64, %c0_8] : memref<176x128xf32, #tpu.memory_space<vmem>>, vector<32x64xf32>
    %c96 = arith.constant 96 : index
    %c0_9 = arith.constant 0 : index
    %6 = vector.load %arg2[%c96, %c0_9] : memref<176x128xf32, #tpu.memory_space<vmem>>, vector<64x32xf32>
    %c160 = arith.constant 160 : index
    %c0_10 = arith.constant 0 : index
    %7 = vector.load %arg2[%c160, %c0_10] : memref<176x128xf32, #tpu.memory_space<vmem>>, vector<1x96xf32>
    %c161 = arith.constant 161 : index
    %c0_11 = arith.constant 0 : index
    %8 = vector.load %arg2[%c161, %c0_11] : memref<176x128xf32, #tpu.memory_space<vmem>>, vector<1x32xf32>
    %c162 = arith.constant 162 : index
    %c0_12 = arith.constant 0 : index
    %9 = vector.load %arg2[%c162, %c0_12] : memref<176x128xf32, #tpu.memory_space<vmem>>, vector<1x32xf32>
    %c163 = arith.constant 163 : index
    %c0_13 = arith.constant 0 : index
    %10 = vector.load %arg2[%c163, %c0_13] : memref<176x128xf32, #tpu.memory_space<vmem>>, vector<1x32xf32>
    %c164 = arith.constant 164 : index
    %c0_14 = arith.constant 0 : index
    %11 = vector.load %arg2[%c164, %c0_14] : memref<176x128xf32, #tpu.memory_space<vmem>>, vector<1x64xf32>
    %c165 = arith.constant 165 : index
    %c0_15 = arith.constant 0 : index
    %12 = vector.load %arg2[%c165, %c0_15] : memref<176x128xf32, #tpu.memory_space<vmem>>, vector<1x32xf32>
    %c166 = arith.constant 166 : index
    %c0_16 = arith.constant 0 : index
    %13 = vector.load %arg2[%c166, %c0_16] : memref<176x128xf32, #tpu.memory_space<vmem>>, vector<1x32xf32>
    %c167 = arith.constant 167 : index
    %c0_17 = arith.constant 0 : index
    %14 = vector.load %arg2[%c167, %c0_17] : memref<176x128xf32, #tpu.memory_space<vmem>>, vector<1x32xf32>
    %c168 = arith.constant 168 : index
    %c0_18 = arith.constant 0 : index
    %15 = vector.load %arg2[%c168, %c0_18] : memref<176x128xf32, #tpu.memory_space<vmem>>, vector<4x32xf32>
    %cst = arith.constant dense<0.000000e+00> : vector<32x96xf32>
    %16 = tpu.matmul %0, %3, %cst {dimension_numbers = #tpu.dot_dimension_numbers<[1], [0], [0], [1], [0, 0, 1, 1], [], []>} : vector<32x32xf32>, vector<32x96xf32>, vector<32x96xf32> -> vector<32x96xf32>
    %17 = vector.broadcast %7 : vector<1x96xf32> to vector<32x96xf32>
    %18 = arith.addf %16, %17 : vector<32x96xf32>
    %19 = vector.extract_strided_slice %18 {offsets = [0, 0], sizes = [16, 32], strides = [1, 1]} : vector<32x96xf32> to vector<16x32xf32>
    %20 = vector.extract_strided_slice %18 {offsets = [16, 32], sizes = [16, 32], strides = [1, 1]} : vector<32x96xf32> to vector<16x32xf32>
    %21 = vector.extract_strided_slice %18 {offsets = [16, 64], sizes = [16, 32], strides = [1, 1]} : vector<32x96xf32> to vector<16x32xf32>
    %22 = vector.extract_strided_slice %15 {offsets = [0, 0], sizes = [1, 32], strides = [1, 1]} : vector<4x32xf32> to vector<1x32xf32>
    %23 = vector.broadcast %22 : vector<1x32xf32> to vector<16x32xf32>
    %24 = arith.mulf %19, %23 : vector<16x32xf32>
    %25 = vector.extract_strided_slice %15 {offsets = [1, 0], sizes = [1, 32], strides = [1, 1]} : vector<4x32xf32> to vector<1x32xf32>
    %26 = vector.broadcast %25 : vector<1x32xf32> to vector<16x32xf32>
    %27 = arith.mulf %19, %26 : vector<16x32xf32>
    %28 = vector.extract_strided_slice %15 {offsets = [2, 0], sizes = [1, 32], strides = [1, 1]} : vector<4x32xf32> to vector<1x32xf32>
    %29 = vector.broadcast %28 : vector<1x32xf32> to vector<16x32xf32>
    %30 = arith.mulf %19, %29 : vector<16x32xf32>
    %31 = vector.extract_strided_slice %15 {offsets = [3, 0], sizes = [1, 32], strides = [1, 1]} : vector<4x32xf32> to vector<1x32xf32>
    %32 = vector.broadcast %31 : vector<1x32xf32> to vector<16x32xf32>
    %33 = arith.mulf %19, %32 : vector<16x32xf32>
    %34 = tpu.concatenate %24, %27, %30, %33 in 0 : vector<16x32xf32>, vector<16x32xf32>, vector<16x32xf32>, vector<16x32xf32> -> vector<64x32xf32>
    %cst_19 = arith.constant dense<0.000000e+00> : vector<64x16xf32>
    %35 = tpu.matmul %34, %20, %cst_19 {dimension_numbers = #tpu.dot_dimension_numbers<[1], [1], [0], [0], [0, 0, 1, 0], [], []>} : vector<64x32xf32>, vector<16x32xf32>, vector<64x16xf32> -> vector<64x16xf32>
    %36 = arith.addf %35, %2 : vector<64x16xf32>
    %cst_20 = arith.constant dense<0xFF800000> : vector<64xf32>
    %37 = vector.multi_reduction <maximumf>, %36, %cst_20 [1] : vector<64x16xf32> to vector<64xf32>
    %38 = vector.shape_cast %37 : vector<64xf32> to vector<64x1xf32>
    %39 = vector.broadcast %38 : vector<64x1xf32> to vector<64x16xf32>
    %40 = arith.subf %36, %39 : vector<64x16xf32>
    %41 = math.exp %40 : vector<64x16xf32>
    %cst_21 = arith.constant dense<0.000000e+00> : vector<64xf32>
    %42 = vector.multi_reduction <add>, %41, %cst_21 [1] : vector<64x16xf32> to vector<64xf32>
    %43 = vector.shape_cast %42 : vector<64xf32> to vector<64x1xf32>
    %44 = vector.broadcast %43 : vector<64x1xf32> to vector<64x16xf32>
    %45 = arith.divf %41, %44 : vector<64x16xf32>
    %cst_22 = arith.constant dense<0.000000e+00> : vector<64x32xf32>
    %46 = tpu.matmul %45, %21, %cst_22 {dimension_numbers = #tpu.dot_dimension_numbers<[1], [0], [0], [1], [0, 0, 1, 1], [], []>} : vector<64x16xf32>, vector<16x32xf32>, vector<64x32xf32> -> vector<64x32xf32>
    %47 = vector.extract_strided_slice %46 {offsets = [0, 0], sizes = [16, 32], strides = [1, 1]} : vector<64x32xf32> to vector<16x32xf32>
    %48 = vector.extract_strided_slice %15 {offsets = [0, 0], sizes = [1, 32], strides = [1, 1]} : vector<4x32xf32> to vector<1x32xf32>
    %49 = vector.broadcast %48 : vector<1x32xf32> to vector<16x32xf32>
    %50 = arith.mulf %47, %49 : vector<16x32xf32>
    %51 = vector.extract_strided_slice %46 {offsets = [16, 0], sizes = [16, 32], strides = [1, 1]} : vector<64x32xf32> to vector<16x32xf32>
    %52 = vector.extract_strided_slice %15 {offsets = [1, 0], sizes = [1, 32], strides = [1, 1]} : vector<4x32xf32> to vector<1x32xf32>
    %53 = vector.broadcast %52 : vector<1x32xf32> to vector<16x32xf32>
    %54 = arith.mulf %51, %53 : vector<16x32xf32>
    %55 = arith.addf %50, %54 : vector<16x32xf32>
    %56 = vector.extract_strided_slice %46 {offsets = [32, 0], sizes = [16, 32], strides = [1, 1]} : vector<64x32xf32> to vector<16x32xf32>
    %57 = vector.extract_strided_slice %15 {offsets = [2, 0], sizes = [1, 32], strides = [1, 1]} : vector<4x32xf32> to vector<1x32xf32>
    %58 = vector.broadcast %57 : vector<1x32xf32> to vector<16x32xf32>
    %59 = arith.mulf %56, %58 : vector<16x32xf32>
    %60 = arith.addf %55, %59 : vector<16x32xf32>
    %61 = vector.extract_strided_slice %46 {offsets = [48, 0], sizes = [16, 32], strides = [1, 1]} : vector<64x32xf32> to vector<16x32xf32>
    %62 = vector.extract_strided_slice %15 {offsets = [3, 0], sizes = [1, 32], strides = [1, 1]} : vector<4x32xf32> to vector<1x32xf32>
    %63 = vector.broadcast %62 : vector<1x32xf32> to vector<16x32xf32>
    %64 = arith.mulf %61, %63 : vector<16x32xf32>
    %65 = arith.addf %60, %64 : vector<16x32xf32>
    %cst_23 = arith.constant dense<0.000000e+00> : vector<16x32xf32>
    %66 = tpu.matmul %65, %4, %cst_23 {dimension_numbers = #tpu.dot_dimension_numbers<[1], [0], [0], [1], [0, 0, 1, 1], [], []>} : vector<16x32xf32>, vector<32x32xf32>, vector<16x32xf32> -> vector<16x32xf32>
    %67 = vector.broadcast %8 : vector<1x32xf32> to vector<16x32xf32>
    %68 = arith.addf %66, %67 : vector<16x32xf32>
    %69 = arith.addf %1, %68 : vector<16x32xf32>
    %cst_24 = arith.constant dense<0.000000e+00> : vector<16xf32>
    %70 = vector.multi_reduction <add>, %69, %cst_24 [1] : vector<16x32xf32> to vector<16xf32>
    %71 = vector.shape_cast %70 : vector<16xf32> to vector<16x1xf32>
    %cst_25 = arith.constant 3.200000e+01 : f32
    %72 = vector.broadcast %cst_25 : f32 to vector<16x1xf32>
    %73 = arith.divf %71, %72 : vector<16x1xf32>
    %74 = vector.broadcast %73 : vector<16x1xf32> to vector<16x32xf32>
    %75 = arith.subf %69, %74 : vector<16x32xf32>
    %76 = arith.mulf %75, %75 : vector<16x32xf32>
    %cst_26 = arith.constant dense<0.000000e+00> : vector<16xf32>
    %77 = vector.multi_reduction <add>, %76, %cst_26 [1] : vector<16x32xf32> to vector<16xf32>
    %78 = vector.shape_cast %77 : vector<16xf32> to vector<16x1xf32>
    %cst_27 = arith.constant 3.200000e+01 : f32
    %79 = vector.broadcast %cst_27 : f32 to vector<16x1xf32>
    %80 = arith.divf %78, %79 : vector<16x1xf32>
    %81 = vector.broadcast %73 : vector<16x1xf32> to vector<16x32xf32>
    %82 = arith.subf %69, %81 : vector<16x32xf32>
    %cst_28 = arith.constant 9.99999996E-13 : f32
    %83 = vector.broadcast %cst_28 : f32 to vector<16x1xf32>
    %84 = arith.addf %80, %83 : vector<16x1xf32>
    %85 = math.rsqrt %84 : vector<16x1xf32>
    %86 = vector.broadcast %85 : vector<16x1xf32> to vector<16x32xf32>
    %87 = arith.mulf %82, %86 : vector<16x32xf32>
    %88 = vector.broadcast %9 : vector<1x32xf32> to vector<16x32xf32>
    %89 = arith.mulf %87, %88 : vector<16x32xf32>
    %90 = vector.broadcast %10 : vector<1x32xf32> to vector<16x32xf32>
    %91 = arith.addf %89, %90 : vector<16x32xf32>
    %cst_29 = arith.constant dense<0.000000e+00> : vector<16x64xf32>
    %92 = tpu.matmul %91, %5, %cst_29 {dimension_numbers = #tpu.dot_dimension_numbers<[1], [0], [0], [1], [0, 0, 1, 1], [], []>} : vector<16x32xf32>, vector<32x64xf32>, vector<16x64xf32> -> vector<16x64xf32>
    %93 = vector.broadcast %11 : vector<1x64xf32> to vector<16x64xf32>
    %94 = arith.addf %92, %93 : vector<16x64xf32>
    %cst_30 = arith.constant 5.000000e-01 : f32
    %95 = vector.broadcast %cst_30 : f32 to vector<16x64xf32>
    %96 = arith.mulf %94, %95 : vector<16x64xf32>
    %cst_31 = arith.constant 1.41421354 : f32
    %97 = vector.broadcast %cst_31 : f32 to vector<16x64xf32>
    %98 = arith.divf %94, %97 : vector<16x64xf32>
    %99 = math.erf %98 : vector<16x64xf32>
    %cst_32 = arith.constant 1.000000e+00 : f32
    %100 = vector.broadcast %cst_32 : f32 to vector<16x64xf32>
    %101 = arith.addf %100, %99 : vector<16x64xf32>
    %102 = arith.mulf %96, %101 : vector<16x64xf32>
    %cst_33 = arith.constant dense<0.000000e+00> : vector<16x32xf32>
    %103 = tpu.matmul %102, %6, %cst_33 {dimension_numbers = #tpu.dot_dimension_numbers<[1], [0], [0], [1], [0, 0, 1, 1], [], []>} : vector<16x64xf32>, vector<64x32xf32>, vector<16x32xf32> -> vector<16x32xf32>
    %104 = vector.broadcast %12 : vector<1x32xf32> to vector<16x32xf32>
    %105 = arith.addf %103, %104 : vector<16x32xf32>
    %106 = arith.addf %105, %91 : vector<16x32xf32>
    %cst_34 = arith.constant dense<0.000000e+00> : vector<16xf32>
    %107 = vector.multi_reduction <add>, %106, %cst_34 [1] : vector<16x32xf32> to vector<16xf32>
    %108 = vector.shape_cast %107 : vector<16xf32> to vector<16x1xf32>
    %cst_35 = arith.constant 3.200000e+01 : f32
    %109 = vector.broadcast %cst_35 : f32 to vector<16x1xf32>
    %110 = arith.divf %108, %109 : vector<16x1xf32>
    %111 = vector.broadcast %110 : vector<16x1xf32> to vector<16x32xf32>
    %112 = arith.subf %106, %111 : vector<16x32xf32>
    %113 = arith.mulf %112, %112 : vector<16x32xf32>
    %cst_36 = arith.constant dense<0.000000e+00> : vector<16xf32>
    %114 = vector.multi_reduction <add>, %113, %cst_36 [1] : vector<16x32xf32> to vector<16xf32>
    %115 = vector.shape_cast %114 : vector<16xf32> to vector<16x1xf32>
    %cst_37 = arith.constant 3.200000e+01 : f32
    %116 = vector.broadcast %cst_37 : f32 to vector<16x1xf32>
    %117 = arith.divf %115, %116 : vector<16x1xf32>
    %118 = vector.broadcast %110 : vector<16x1xf32> to vector<16x32xf32>
    %119 = arith.subf %106, %118 : vector<16x32xf32>
    %cst_38 = arith.constant 9.99999996E-13 : f32
    %120 = vector.broadcast %cst_38 : f32 to vector<16x1xf32>
    %121 = arith.addf %117, %120 : vector<16x1xf32>
    %122 = math.rsqrt %121 : vector<16x1xf32>
    %123 = vector.broadcast %122 : vector<16x1xf32> to vector<16x32xf32>
    %124 = arith.mulf %119, %123 : vector<16x32xf32>
    %125 = vector.broadcast %13 : vector<1x32xf32> to vector<16x32xf32>
    %126 = arith.mulf %124, %125 : vector<16x32xf32>
    %127 = vector.broadcast %14 : vector<1x32xf32> to vector<16x32xf32>
    %128 = arith.addf %126, %127 : vector<16x32xf32>
    %c0_39 = arith.constant 0 : index
    %c0_40 = arith.constant 0 : index
    %129 = vector.load %arg3[%c0_39, %c0_40] : memref<16x32xf32, #tpu.memory_space<vmem>>, vector<16x32xf32>
    tpu.vector_store %arg3[%c0_39, %c0_40], %128 {strides = array<i32>} : memref<16x32xf32, #tpu.memory_space<vmem>>, vector<16x32xf32>,
    return
  }
  func.func @transform_0(%arg0: i32) -> (i32, i32) {
    %c0_i32 = arith.constant 0 : i32
    %c0_i32_0 = arith.constant 0 : i32
    %c0_i32_1 = arith.constant 0 : i32
    return %c0_i32, %c0_i32_0 : i32, i32
  }
  func.func @transform_1(%arg0: i32) -> (i32, i32) {
    %c0_i32 = arith.constant 0 : i32
    %c0_i32_0 = arith.constant 0 : i32
    %c0_i32_1 = arith.constant 0 : i32
    return %c0_i32, %c0_i32_0 : i32, i32
  }
  func.func @transform_2(%arg0: i32) -> (i32, i32) {
    %c0_i32 = arith.constant 0 : i32
    %c0_i32_0 = arith.constant 0 : i32
    %c0_i32_1 = arith.constant 0 : i32
    return %c0_i32, %c0_i32_0 : i32, i32
  }
}

</mosaic_0001>

<llo_original>
// kernel: trm_coatt.1
$region0: #{trm_coatt.1}
  #allocation0 [shape = 'u32[]', space=smem, size = 0x4, offset = 0x4, fixed_abs, tag = 'smem constant byte address 0x4 - core index']
  #allocation1 [shape = 'u32[72,128]{1,0:T(1,128)}', space=vmem, size = 0x9000, scoped, tag = 'internal scratch']
  %s0 = inlined_call_operand.vmem [shape: f32[96,32], index: 0, kind: input, shape index: {}]
  %s1 = inlined_call_operand.vmem [shape: f32[176,128], index: 1, kind: input, shape index: {}]
  %s2 = inlined_call_operand.hbm [shape: f32[16,32], index: 2, kind: output, shape index: {}]
  %s3 = sld [smem:[#allocation0]]
  $region18: #{trm_coatt.1} parent=0
    _
  %s5 = ssub.s32 1, %s3
  %s6 = scalar_select 0, %s5, %s3
  $region1: #{trm_coatt.1} parent=0
    #allocation2 [shape = 'u8[8192]{0}', space=vmem, size = 0x2000, scoped, tag = 'output window, operand 0, single buffered']
    #allocation3 [shape = 's32[1]{0}', space=sflag, size = 0x4, scoped, tag = 'scoped memory for trm_coatt.1']
    %7 = vsyncpa [#allocation3], 0
    // Predicated region
    $region2: #{trm_coatt.1} parent=1 // pred_check
      _
    $region3: #{trm_coatt.1} parent=1 // pred_check_branch
      %9 = sbr.rel (0) target = $region5
    $region4: #{trm_coatt.1} parent=1 // pred_region
      _
    $region5: #{trm_coatt.1} parent=1 // pred_fallthru
      _
    // Predicated region
    $region6: #{trm_coatt.1} parent=1 // pred_check
      _
    $region7: #{trm_coatt.1} parent=1 // pred_check_branch
      %11 = sbr.rel (0) target = $region9
    $region8: #{trm_coatt.1} parent=1 // pred_region
      _
    $region9: #{trm_coatt.1} parent=1 // pred_fallthru
      _
    %v12 = vld [vmem:[%s0] sm:$0xff]
    %v13 = vld [vmem:[%s0 + $0x8] sm:$0xff]
    %v14 = vld [vmem:[%s0 + $0x10] sm:$0xff]
    %v15 = vld [vmem:[%s0 + $0x18] sm:$0xff]
    %v16 = vld [vmem:[%s0 + $0x20] sm:$0xff]
    %v17 = vld [vmem:[%s0 + $0x28] sm:$0xff]
    %v18 = vld [vmem:[%s0 + $0x30] sm:$0xff]
    %v19 = vld [vmem:[%s0 + $0x38] sm:$0xff]
    %v20 = vld [vmem:[%s0 + $0x40] sm:$0xff]
    %v21 = vld [vmem:[%s0 + $0x48] sm:$0xff]
    %v22 = vld [vmem:[%s0 + $0x50] sm:$0xff]
    %v23 = vld [vmem:[%s0 + $0x58] sm:$0xff]
    %v24 = vld [vmem:[%s1] sm:$0xff]
    %v25 = vld [vmem:[%s1 + $0x8] sm:$0xff]
    %v26 = vld [vmem:[%s1 + $0x10] sm:$0xff]
    %v27 = vld [vmem:[%s1 + $0x18] sm:$0xff]
    %v28 = vld [vmem:[%s1 + $0x20] sm:$0xff]
    %v29 = vld [vmem:[%s1 + $0x28] sm:$0xff]
    %v30 = vld [vmem:[%s1 + $0x30] sm:$0xff]
    %v31 = vld [vmem:[%s1 + $0x38] sm:$0xff]
    %v32 = vld [vmem:[%s1 + $0x40] sm:$0xff]
    %v33 = vld [vmem:[%s1 + $0x48] sm:$0xff]
    %v34 = vld [vmem:[%s1 + $0x50] sm:$0xff]
    %v35 = vld [vmem:[%s1 + $0x58] sm:$0xff]
    %v36 = vld [vmem:[%s1 + $0x60] sm:$0xff]
    %v37 = vld [vmem:[%s1 + $0x68] sm:$0xff]
    %v38 = vld [vmem:[%s1 + $0x70] sm:$0xff]
    %v39 = vld [vmem:[%s1 + $0x78] sm:$0xff]
    %v40 = vld [vmem:[%s1 + $0x80] sm:$0xff]
    %v41 = vld [vmem:[%s1 + $0x88] sm:$0xff]
    %v42 = vld [vmem:[%s1 + $0x90] sm:$0xff]
    %v43 = vld [vmem:[%s1 + $0x98] sm:$0xff]
    %v44 = vld [vmem:[%s1 + $0xa0] sm:$0x1]
    %v45 = vld [vmem:[%s1 + $0xa1] sm:$0x1]
    %v46 = vld [vmem:[%s1 + $0xa2] sm:$0x1]
    %v47 = vld [vmem:[%s1 + $0xa3] sm:$0x1]
    %v48 = vld [vmem:[%s1 + $0xa4] sm:$0x1]
    %v49 = vld [vmem:[%s1 + $0xa5] sm:$0x1]
    %v50 = vld [vmem:[%s1 + $0xa6] sm:$0x1]
    %v51 = vld [vmem:[%s1 + $0xa7] sm:$0x1]
    %v52 = vld [vmem:[%s1 + $0xa8] sm:$0xf]
    %v53 = vperm.slane %v44, 0
    %vm54 = vcmask 261120
    %v56 = vsel %vm54, %v12, 0
    %v59 = vsel %vm54, %v13, 0
    %v62 = vsel %vm54, %v14, 0
    %v65 = vsel %vm54, %v15, 0
    %67 = vmatpush.msra.mxu0 0.0
    %68 = vmatpush.msra.mxu0 0.0
    %69 = vmatpush.msra.mxu0 0.0
    %70 = vmatpush.msra.mxu0 0.0
    %71 = vmatpush.msra.mxu0 0.0
    %72 = vmatpush.msra.mxu0 0.0
    %73 = vmatpush.msra.mxu0 0.0
    %74 = vmatpush.msra.mxu0 0.0
    %75 = vmatpush.msra.mxu0 0.0
    %76 = vmatpush.msra.mxu0 0.0
    %77 = vmatpush.msra.mxu0 0.0
    %78 = vmatpush.msra.mxu0 0.0
    %79 = vmatpush.msra.mxu0 %v27
    %80 = vmatpush.msra.mxu0 %v26
    %81 = vmatpush.msra.mxu0 %v25
    %82 = vmatpush.msra.mxu0 %v24
    %83 = vmatmul.f32.gmra.mxu0 %v56
    %v84 = vpop.f32.mrf.mxu0
    %v85 = vadd.f32 %v53, %v84
    %86 = vmatmul.f32.gmra.mxu0 %v59
    %v87 = vpop.f32.mrf.mxu0
    %v88 = vadd.f32 %v53, %v87
    %89 = vmatmul.f32.gmra.mxu0 %v62
    %v90 = vpop.f32.mrf.mxu0
    %v91 = vadd.f32 %v53, %v90
    %92 = vmatmul.f32.gmra.mxu0 %v65
    %v93 = vpop.f32.mrf.mxu0
    %v94 = vadd.f32 %v53, %v93
    %95 = vdwg.mxu0
    %v96 = vperm.slane %v52, 0
    %v97 = vmul.f32 %v85, %v96
    %v98 = vmul.f32 %v88, %v96
    %v99 = vperm.slane %v52, 1
    %v100 = vmul.f32 %v85, %v99
    %v101 = vmul.f32 %v88, %v99
    %v102 = vperm.slane %v52, 2
    %v103 = vmul.f32 %v85, %v102
    %v104 = vmul.f32 %v88, %v102
    %v105 = vperm.slane %v52, 3
    %v106 = vmul.f32 %v85, %v105
    %v107 = vmul.f32 %v88, %v105
    %110 = vrot.lane.b32.xlu0 %v91, 96
    %v111 = vpop.permute.xlu0 %110
    %112 = vrot.lane.b32.xlu0 %v94, 96
    %v113 = vpop.permute.xlu0 %112
    %v115 = vsel %vm54, %v97, 0
    %v118 = vsel %vm54, %v98, 0
    %v121 = vsel %vm54, %v100, 0
    %v124 = vsel %vm54, %v101, 0
    %v127 = vsel %vm54, %v103, 0
    %v130 = vsel %vm54, %v104, 0
    %v133 = vsel %vm54, %v106, 0
    %v136 = vsel %vm54, %v107, 0
    %v138 = vsel %vm54, %v111, 0
    %v140 = vsel %vm54, %v113, 0
    %142 = vmatpush.xpose.msra.mxu0 0.0
    %143 = vmatpush.xpose.msra.mxu0 0.0
    %144 = vmatpush.xpose.msra.mxu0 0.0
    %145 = vmatpush.xpose.msra.mxu0 0.0
    %146 = vmatpush.xpose.msra.mxu0 0.0
    %147 = vmatpush.xpose.msra.mxu0 0.0
    %148 = vmatpush.xpose.msra.mxu0 0.0
    %149 = vmatpush.xpose.msra.mxu0 0.0
    %150 = vmatpush.xpose.msra.mxu0 0.0
    %151 = vmatpush.xpose.msra.mxu0 0.0
    %152 = vmatpush.xpose.msra.mxu0 0.0
    %153 = vmatpush.xpose.msra.mxu0 0.0
    %154 = vmatpush.xpose.msra.mxu0 0.0
    %155 = vmatpush.xpose.msra.mxu0 0.0
    %156 = vmatpush.xpose.msra.mxu0 %v140
    %157 = vmatpush.xpose.msra.mxu0 %v138
    %158 = vmatmul.f32.gmra.mxu0 %v115
    %v159 = vpop.f32.mrf.mxu0
    %v160 = vadd.f32 %v16, %v159
    %161 = vmatmul.f32.gmra.mxu0 %v118
    %v162 = vpop.f32.mrf.mxu0
    %v163 = vadd.f32 %v17, %v162
    %164 = vmatmul.f32.gmra.mxu0 %v121
    %v165 = vpop.f32.mrf.mxu0
    %v166 = vadd.f32 %v18, %v165
    %167 = vmatmul.f32.gmra.mxu0 %v124
    %v168 = vpop.f32.mrf.mxu0
    %v169 = vadd.f32 %v19, %v168
    %170 = vmatmul.f32.gmra.mxu0 %v127
    %v171 = vpop.f32.mrf.mxu0
    %v172 = vadd.f32 %v20, %v171
    %173 = vmatmul.f32.gmra.mxu0 %v130
    %v174 = vpop.f32.mrf.mxu0
    %v175 = vadd.f32 %v21, %v174
    %176 = vmatmul.f32.gmra.mxu0 %v133
    %v177 = vpop.f32.mrf.mxu0
    %v178 = vadd.f32 %v22, %v177
    %179 = vmatmul.f32.gmra.mxu0 %v136
    %v180 = vpop.f32.mrf.mxu0
    %v181 = vadd.f32 %v23, %v180
    %182 = vdwg.mxu0
    %vm183 = vcmask 130048
    %v184 = vsel %vm183, %v160, -inf
    %185 = vmax.xlane.f32.xlu0 %v184
    %v186 = vpop.xlane.xlu0 %185
    %v187 = vsel %vm183, %v163, -inf
    %188 = vmax.xlane.f32.xlu0 %v187
    %v189 = vpop.xlane.xlu0 %188
    %v190 = vsel %vm183, %v166, -inf
    %191 = vmax.xlane.f32.xlu0 %v190
    %v192 = vpop.xlane.xlu0 %191
    %v193 = vsel %vm183, %v169, -inf
    %194 = vmax.xlane.f32.xlu0 %v193
    %v195 = vpop.xlane.xlu0 %194
    %v196 = vsel %vm183, %v172, -inf
    %197 = vmax.xlane.f32.xlu0 %v196
    %v198 = vpop.xlane.xlu0 %197
    %v199 = vsel %vm183, %v175, -inf
    %200 = vmax.xlane.f32.xlu0 %v199
    %v201 = vpop.xlane.xlu0 %200
    %v202 = vsel %vm183, %v178, -inf
    %203 = vmax.xlane.f32.xlu0 %v202
    %v204 = vpop.xlane.xlu0 %203
    %v205 = vsel %vm183, %v181, -inf
    %206 = vmax.xlane.f32.xlu0 %v205
    %v207 = vpop.xlane.xlu0 %206
    %v208 = vsub.f32 %v160, %v186
    %v209 = vsub.f32 %v163, %v189
    %v210 = vsub.f32 %v166, %v192
    %v211 = vsub.f32 %v169, %v195
    %v212 = vsub.f32 %v172, %v198
    %v213 = vsub.f32 %v175, %v201
    %v214 = vsub.f32 %v178, %v204
    %v215 = vsub.f32 %v181, %v207
    %v216 = vmul.f32 %v208, 1.442695
    %v217 = vpow.pop %v216
    %v218 = vmul.f32 %v209, 1.442695
    %v219 = vpow.pop %v218
    %v220 = vmul.f32 %v210, 1.442695
    %v221 = vpow.pop %v220
    %v222 = vmul.f32 %v211, 1.442695
    %v223 = vpow.pop %v222
    %v224 = vmul.f32 %v212, 1.442695
    %v225 = vpow.pop %v224
    %v226 = vmul.f32 %v213, 1.442695
    %v227 = vpow.pop %v226
    %v228 = vmul.f32 %v214, 1.442695
    %v229 = vpow.pop %v228
    %v230 = vmul.f32 %v215, 1.442695
    %v231 = vpow.pop %v230
    %v232 = vsel %vm183, %v217, 0.0
    %233 = vadd.xlane.f32.xlu0 %v232
    %v234 = vpop.xlane.xlu0 %233
    %v235 = vsel %vm183, %v219, 0.0
    %236 = vadd.xlane.f32.xlu0 %v235
    %v237 = vpop.xlane.xlu0 %236
    %v238 = vsel %vm183, %v221, 0.0
    %239 = vadd.xlane.f32.xlu0 %v238
    %v240 = vpop.xlane.xlu0 %239
    %v241 = vsel %vm183, %v223, 0.0
    %242 = vadd.xlane.f32.xlu0 %v241
    %v243 = vpop.xlane.xlu0 %242
    %v244 = vsel %vm183, %v225, 0.0
    %245 = vadd.xlane.f32.xlu0 %v244
    %v246 = vpop.xlane.xlu0 %245
    %v247 = vsel %vm183, %v227, 0.0
    %248 = vadd.xlane.f32.xlu0 %v247
    %v249 = vpop.xlane.xlu0 %248
    %v250 = vsel %vm183, %v229, 0.0
    %251 = vadd.xlane.f32.xlu0 %v250
    %v252 = vpop.xlane.xlu0 %251
    %v253 = vsel %vm183, %v231, 0.0
    %254 = vadd.xlane.f32.xlu0 %v253
    %v255 = vpop.xlane.xlu0 %254
    %v256 = vrcp.pop %v234
    %v257 = vmul.f32 %v234, %v256
    %v258 = vsub.f32 1.0, %v257
    %v259 = vmul.f32 %v256, %v258
    %v260 = vadd.f32 %v256, %v259
    %vm261 = vweird.f32 %v234
    %vm262 = vweird.f32 %v256
    %vm263 = vmor %vm261, %vm262
    %v264 = vsel %vm263, %v256, %v260
    %v265 = vand.u32 2147483647, %v234
    %vm266 = vcmp.eq.f32.partialorder %v265, 8.507059e+37
    %v267 = vand.u32 %v234, 2147483648
    %v268 = vor.u32 1.1754944e-38, %v267
    %v269 = vsel %vm266, %v268, %v264
    %v270 = vmul.f32 %v217, %v269
    %v271 = vrcp.pop %v237
    %v272 = vmul.f32 %v237, %v271
    %v273 = vsub.f32 1.0, %v272
    %v274 = vmul.f32 %v271, %v273
    %v275 = vadd.f32 %v271, %v274
    %vm276 = vweird.f32 %v237
    %vm277 = vweird.f32 %v271
    %vm278 = vmor %vm276, %vm277
    %v279 = vsel %vm278, %v271, %v275
    %v280 = vand.u32 2147483647, %v237
    %vm281 = vcmp.eq.f32.partialorder %v280, 8.507059e+37
    %v282 = vand.u32 %v237, 2147483648
    %v283 = vor.u32 1.1754944e-38, %v282
    %v284 = vsel %vm281, %v283, %v279
    %v285 = vmul.f32 %v219, %v284
    %v286 = vrcp.pop %v240
    %v287 = vmul.f32 %v240, %v286
    %v288 = vsub.f32 1.0, %v287
    %v289 = vmul.f32 %v286, %v288
    %v290 = vadd.f32 %v286, %v289
    %vm291 = vweird.f32 %v240
    %vm292 = vweird.f32 %v286
    %vm293 = vmor %vm291, %vm292
    %v294 = vsel %vm293, %v286, %v290
    %v295 = vand.u32 2147483647, %v240
    %vm296 = vcmp.eq.f32.partialorder %v295, 8.507059e+37
    %v297 = vand.u32 %v240, 2147483648
    %v298 = vor.u32 1.1754944e-38, %v297
    %v299 = vsel %vm296, %v298, %v294
    %v300 = vmul.f32 %v221, %v299
    %v301 = vrcp.pop %v243
    %v302 = vmul.f32 %v243, %v301
    %v303 = vsub.f32 1.0, %v302
    %v304 = vmul.f32 %v301, %v303
    %v305 = vadd.f32 %v301, %v304
    %vm306 = vweird.f32 %v243
    %vm307 = vweird.f32 %v301
    %vm308 = vmor %vm306, %vm307
    %v309 = vsel %vm308, %v301, %v305
    %v310 = vand.u32 2147483647, %v243
    %vm311 = vcmp.eq.f32.partialorder %v310, 8.507059e+37
    %v312 = vand.u32 %v243, 2147483648
    %v313 = vor.u32 1.1754944e-38, %v312
    %v314 = vsel %vm311, %v313, %v309
    %v315 = vmul.f32 %v223, %v314
    %v316 = vrcp.pop %v246
    %v317 = vmul.f32 %v246, %v316
    %v318 = vsub.f32 1.0, %v317
    %v319 = vmul.f32 %v316, %v318
    %v320 = vadd.f32 %v316, %v319
    %vm321 = vweird.f32 %v246
    %vm322 = vweird.f32 %v316
    %vm323 = vmor %vm321, %vm322
    %v324 = vsel %vm323, %v316, %v320
    %v325 = vand.u32 2147483647, %v246
    %vm326 = vcmp.eq.f32.partialorder %v325, 8.507059e+37
    %v327 = vand.u32 %v246, 2147483648
    %v328 = vor.u32 1.1754944e-38, %v327
    %v329 = vsel %vm326, %v328, %v324
    %v330 = vmul.f32 %v225, %v329
    %v331 = vrcp.pop %v249
    %v332 = vmul.f32 %v249, %v331
    %v333 = vsub.f32 1.0, %v332
    %v334 = vmul.f32 %v331, %v333
    %v335 = vadd.f32 %v331, %v334
    %vm336 = vweird.f32 %v249
    %vm337 = vweird.f32 %v331
    %vm338 = vmor %vm336, %vm337
    %v339 = vsel %vm338, %v331, %v335
    %v340 = vand.u32 2147483647, %v249
    %vm341 = vcmp.eq.f32.partialorder %v340, 8.507059e+37
    %v342 = vand.u32 %v249, 2147483648
    %v343 = vor.u32 1.1754944e-38, %v342
    %v344 = vsel %vm341, %v343, %v339
    %v345 = vmul.f32 %v227, %v344
    %v346 = vrcp.pop %v252
    %v347 = vmul.f32 %v252, %v346
    %v348 = vsub.f32 1.0, %v347
    %v349 = vmul.f32 %v346, %v348
    %v350 = vadd.f32 %v346, %v349
    %vm351 = vweird.f32 %v252
    %vm352 = vweird.f32 %v346
    %vm353 = vmor %vm351, %vm352
    %v354 = vsel %vm353, %v346, %v350
    %v355 = vand.u32 2147483647, %v252
    %vm356 = vcmp.eq.f32.partialorder %v355, 8.507059e+37
    %v357 = vand.u32 %v252, 2147483648
    %v358 = vor.u32 1.1754944e-38, %v357
    %v359 = vsel %vm356, %v358, %v354
    %v360 = vmul.f32 %v229, %v359
    %v361 = vrcp.pop %v255
    %v362 = vmul.f32 %v255, %v361
    %v363 = vsub.f32 1.0, %v362
    %v364 = vmul.f32 %v361, %v363
    %v365 = vadd.f32 %v361, %v364
    %vm366 = vweird.f32 %v255
    %vm367 = vweird.f32 %v361
    %vm368 = vmor %vm366, %vm367
    %v369 = vsel %vm368, %v361, %v365
    %v370 = vand.u32 2147483647, %v255
    %vm371 = vcmp.eq.f32.partialorder %v370, 8.507059e+37
    %v372 = vand.u32 %v255, 2147483648
    %v373 = vor.u32 1.1754944e-38, %v372
    %v374 = vsel %vm371, %v373, %v369
    %v375 = vmul.f32 %v231, %v374
    %376 = vrot.lane.b32.xlu0 %v91, 64
    %v377 = vpop.permute.xlu0 %376
    %378 = vrot.lane.b32.xlu0 %v94, 64
    %v379 = vpop.permute.xlu0 %378
    %v383 = vsel %vm183, %v270, 0
    %v386 = vsel %vm183, %v285, 0
    %v389 = vsel %vm183, %v300, 0
    %v392 = vsel %vm183, %v315, 0
    %v395 = vsel %vm183, %v330, 0
    %v398 = vsel %vm183, %v345, 0
    %v401 = vsel %vm183, %v360, 0
    %v404 = vsel %vm183, %v375, 0
    %406 = vmatpush.msra.mxu0 0.0
    %407 = vmatpush.msra.mxu0 0.0
    %408 = vmatpush.msra.mxu0 0.0
    %409 = vmatpush.msra.mxu0 0.0
    %410 = vmatpush.msra.mxu0 0.0
    %411 = vmatpush.msra.mxu0 0.0
    %412 = vmatpush.msra.mxu0 0.0
    %413 = vmatpush.msra.mxu0 0.0
    %414 = vmatpush.msra.mxu0 0.0
    %415 = vmatpush.msra.mxu0 0.0
    %416 = vmatpush.msra.mxu0 0.0
    %417 = vmatpush.msra.mxu0 0.0
    %418 = vmatpush.msra.mxu0 0.0
    %419 = vmatpush.msra.mxu0 0.0
    %420 = vmatpush.msra.mxu0 %v379
    %421 = vmatpush.msra.mxu0 %v377
    %422 = vmatmul.f32.gmra.mxu0 %v383
    %v423 = vpop.f32.mrf.mxu0
    %v424 = vadd.f32 0.0, %v423
    %425 = vmatmul.f32.gmra.mxu0 %v386
    %v426 = vpop.f32.mrf.mxu0
    %v427 = vadd.f32 0.0, %v426
    %428 = vmatmul.f32.gmra.mxu0 %v389
    %v429 = vpop.f32.mrf.mxu0
    %v430 = vadd.f32 0.0, %v429
    %431 = vmatmul.f32.gmra.mxu0 %v392
    %v432 = vpop.f32.mrf.mxu0
    %v433 = vadd.f32 0.0, %v432
    %434 = vmatmul.f32.gmra.mxu0 %v395
    %v435 = vpop.f32.mrf.mxu0
    %v436 = vadd.f32 0.0, %v435
    %437 = vmatmul.f32.gmra.mxu0 %v398
    %v438 = vpop.f32.mrf.mxu0
    %v439 = vadd.f32 0.0, %v438
    %440 = vmatmul.f32.gmra.mxu0 %v401
    %v441 = vpop.f32.mrf.mxu0
    %v442 = vadd.f32 0.0, %v441
    %443 = vmatmul.f32.gmra.mxu0 %v404
    %v444 = vpop.f32.mrf.mxu0
    %v445 = vadd.f32 0.0, %v444
    %446 = vdwg.mxu0
    %v447 = vmul.f32 %v424, %v96
    %v448 = vmul.f32 %v427, %v96
    %v449 = vmul.f32 %v430, %v99
    %v450 = vmul.f32 %v433, %v99
    %v451 = vadd.f32 %v447, %v449
    %v452 = vadd.f32 %v448, %v450
    %v453 = vmul.f32 %v436, %v102
    %v454 = vmul.f32 %v439, %v102
    %v455 = vadd.f32 %v451, %v453
    %v456 = vadd.f32 %v452, %v454
    %v457 = vmul.f32 %v442, %v105
    %v458 = vmul.f32 %v445, %v105
    %v459 = vadd.f32 %v455, %v457
    %v460 = vadd.f32 %v456, %v458
    %v461 = vperm.slane %v45, 0
    %v463 = vsel %vm54, %v459, 0
    %v466 = vsel %vm54, %v460, 0
    %468 = vmatpush.msra.mxu0 0.0
    %469 = vmatpush.msra.mxu0 0.0
    %470 = vmatpush.msra.mxu0 0.0
    %471 = vmatpush.msra.mxu0 0.0
    %472 = vmatpush.msra.mxu0 0.0
    %473 = vmatpush.msra.mxu0 0.0
    %474 = vmatpush.msra.mxu0 0.0
    %475 = vmatpush.msra.mxu0 0.0
    %476 = vmatpush.msra.mxu0 0.0
    %477 = vmatpush.msra.mxu0 0.0
    %478 = vmatpush.msra.mxu0 0.0
    %479 = vmatpush.msra.mxu0 0.0
    %480 = vmatpush.msra.mxu0 %v31
    %481 = vmatpush.msra.mxu0 %v30
    %482 = vmatpush.msra.mxu0 %v29
    %483 = vmatpush.msra.mxu0 %v28
    %484 = vmatmul.f32.gmra.mxu0 %v463
    %v485 = vpop.f32.mrf.mxu0
    %v486 = vadd.f32 %v461, %v485
    %487 = vmatmul.f32.gmra.mxu0 %v466
    %v488 = vpop.f32.mrf.mxu0
    %v489 = vadd.f32 %v461, %v488
    %490 = vdwg.mxu0
    %v491 = vadd.f32 %v12, %v486
    %v492 = vadd.f32 %v13, %v489
    %v493 = vsel %vm54, %v491, 0.0
    %494 = vadd.xlane.f32.xlu0 %v493
    %v495 = vpop.xlane.xlu0 %494
    %v496 = vsel %vm54, %v492, 0.0
    %497 = vadd.xlane.f32.xlu0 %v496
    %v498 = vpop.xlane.xlu0 %497
    %v499 = vrcp.pop 32.0
    %v500 = vmul.f32 32.0, %v499
    %v501 = vsub.f32 1.0, %v500
    %v502 = vmul.f32 %v499, %v501
    %v503 = vadd.f32 %v499, %v502
    %vm504 = vweird.f32 %v499
    %v505 = vsel %vm504, %v499, %v503
    %v506 = vmul.f32 %v495, %v505
    %v507 = vmul.f32 %v498, %v505
    %v508 = vsub.f32 %v491, %v506
    %v509 = vsub.f32 %v492, %v507
    %v510 = vmul.f32 %v508, %v508
    %v511 = vmul.f32 %v509, %v509
    %v512 = vsel %vm54, %v510, 0.0
    %513 = vadd.xlane.f32.xlu0 %v512
    %v514 = vpop.xlane.xlu0 %513
    %v515 = vsel %vm54, %v511, 0.0
    %516 = vadd.xlane.f32.xlu0 %v515
    %v517 = vpop.xlane.xlu0 %516
    %v518 = vmul.f32 %v514, %v505
    %v519 = vmul.f32 %v517, %v505
    %v520 = vadd.f32 %v518, 1e-12
    %v521 = vadd.f32 %v519, 1e-12
    %v522 = vrsqrt.pop %v520
    %v523 = vmul.f32 %v522, %v520
    %v524 = vmul.f32 %v523, %v522
    %v525 = vmul.f32 0.5, %v524
    %v526 = vsub.f32 1.5, %v525
    %v527 = vmul.f32 %v522, %v526
    %vm528 = vweird.f32 %v520
    %vm529 = vweird.f32 %v522
    %vm530 = vmor %vm528, %vm529
    %v531 = vsel %vm530, %v522, %v527
    %v532 = vrsqrt.pop %v521
    %v533 = vmul.f32 %v532, %v521
    %v534 = vmul.f32 %v533, %v532
    %v535 = vmul.f32 0.5, %v534
    %v536 = vsub.f32 1.5, %v535
    %v537 = vmul.f32 %v532, %v536
    %vm538 = vweird.f32 %v521
    %vm539 = vweird.f32 %v532
    %vm540 = vmor %vm538, %vm539
    %v541 = vsel %vm540, %v532, %v537
    %v542 = vmul.f32 %v508, %v531
    %v543 = vmul.f32 %v509, %v541
    %v544 = vperm.slane %v46, 0
    %v545 = vmul.f32 %v542, %v544
    %v546 = vmul.f32 %v543, %v544
    %v547 = vperm.slane %v47, 0
    %v548 = vadd.f32 %v545, %v547
    %v549 = vadd.f32 %v546, %v547
    %v550 = vperm.slane %v48, 0
    %v552 = vsel %vm54, %v548, 0
    %v555 = vsel %vm54, %v549, 0
    %557 = vmatpush.msra.mxu0 0.0
    %558 = vmatpush.msra.mxu0 0.0
    %559 = vmatpush.msra.mxu0 0.0
    %560 = vmatpush.msra.mxu0 0.0
    %561 = vmatpush.msra.mxu0 0.0
    %562 = vmatpush.msra.mxu0 0.0
    %563 = vmatpush.msra.mxu0 0.0
    %564 = vmatpush.msra.mxu0 0.0
    %565 = vmatpush.msra.mxu0 0.0
    %566 = vmatpush.msra.mxu0 0.0
    %567 = vmatpush.msra.mxu0 0.0
    %568 = vmatpush.msra.mxu0 0.0
    %569 = vmatpush.msra.mxu0 %v35
    %570 = vmatpush.msra.mxu0 %v34
    %571 = vmatpush.msra.mxu0 %v33
    %572 = vmatpush.msra.mxu0 %v32
    %573 = vmatmul.f32.gmra.mxu0 %v552
    %v574 = vpop.f32.mrf.mxu0
    %v575 = vadd.f32 %v550, %v574
    %576 = vmatmul.f32.gmra.mxu0 %v555
    %v577 = vpop.f32.mrf.mxu0
    %v578 = vadd.f32 %v550, %v577
    %579 = vdwg.mxu0
    %v580 = vmul.f32 %v575, 0.5
    %v581 = vmul.f32 %v578, 0.5
    %v582 = vrcp.pop 1.4142135
    %v583 = vmul.f32 1.4142135, %v582
    %v584 = vsub.f32 1.0, %v583
    %v585 = vmul.f32 %v582, %v584
    %v586 = vadd.f32 %v582, %v585
    %vm587 = vweird.f32 %v582
    %v588 = vsel %vm587, %v582, %v586
    %v589 = vmul.f32 %v575, %v588
    %v590 = vmul.f32 %v578, %v588
    %v591 = vmul.f32 %v589, %v589
    %v592 = vmin.f32 16.0, %v591
    %v593 = vmul.f32 %v592, 2.1237322e-06
    %v594 = vadd.f32 %v593, 0.00028619796
    %v595 = vmul.f32 %v592, %v594
    %v596 = vadd.f32 %v595, 0.0036580483
    %v597 = vmul.f32 %v592, %v596
    %v598 = vadd.f32 %v597, 0.05243302
    %v599 = vmul.f32 %v592, %v598
    %v600 = vadd.f32 %v599, 0.18741608
    %v601 = vmul.f32 %v592, %v600
    %v602 = vadd.f32 %v601, 1.1283791
    %v603 = vmul.f32 %v589, %v602
    %v604 = vmul.f32 %v592, 3.8918573e-05
    %v605 = vadd.f32 %v604, 0.001143296
    %v606 = vmul.f32 %v592, %v605
    %v607 = vadd.f32 %v606, 0.014752088
    %v608 = vmul.f32 %v592, %v607
    %v609 = vadd.f32 %v608, 0.112945676
    %v610 = vmul.f32 %v592, %v609
    %v611 = vadd.f32 %v610, 0.4994258
    %v612 = vmul.f32 %v592, %v611
    %v613 = vadd.f32 %v612, 1.0
    %v614 = vrcp.pop %v613
    %v615 = vmul.f32 %v613, %v614
    %v616 = vsub.f32 1.0, %v615
    %v617 = vmul.f32 %v614, %v616
    %v618 = vadd.f32 %v614, %v617
    %vm619 = vweird.f32 %v613
    %vm620 = vweird.f32 %v614
    %vm621 = vmor %vm619, %vm620
    %v622 = vsel %vm621, %v614, %v618
    %v623 = vand.u32 2147483647, %v613
    %vm624 = vcmp.eq.f32.partialorder %v623, 8.507059e+37
    %v625 = vand.u32 %v613, 2147483648
    %v626 = vor.u32 1.1754944e-38, %v625
    %v627 = vsel %vm624, %v626, %v622
    %v628 = vmul.f32 %v603, %v627
    %v629 = vmin.f32 %v628, 1.0
    %v630 = vmax.f32 %v629, -1.0
    %v631 = vmul.f32 %v590, %v590
    %v632 = vmin.f32 16.0, %v631
    %v633 = vmul.f32 %v632, 2.1237322e-06
    %v634 = vadd.f32 %v633, 0.00028619796
    %v635 = vmul.f32 %v632, %v634
    %v636 = vadd.f32 %v635, 0.0036580483
    %v637 = vmul.f32 %v632, %v636
    %v638 = vadd.f32 %v637, 0.05243302
    %v639 = vmul.f32 %v632, %v638
    %v640 = vadd.f32 %v639, 0.18741608
    %v641 = vmul.f32 %v632, %v640
    %v642 = vadd.f32 %v641, 1.1283791
    %v643 = vmul.f32 %v590, %v642
    %v644 = vmul.f32 %v632, 3.8918573e-05
    %v645 = vadd.f32 %v644, 0.001143296
    %v646 = vmul.f32 %v632, %v645
    %v647 = vadd.f32 %v646, 0.014752088
    %v648 = vmul.f32 %v632, %v647
    %v649 = vadd.f32 %v648, 0.112945676
    %v650 = vmul.f32 %v632, %v649
    %v651 = vadd.f32 %v650, 0.4994258
    %v652 = vmul.f32 %v632, %v651
    %v653 = vadd.f32 %v652, 1.0
    %v654 = vrcp.pop %v653
    %v655 = vmul.f32 %v653, %v654
    %v656 = vsub.f32 1.0, %v655
    %v657 = vmul.f32 %v654, %v656
    %v658 = vadd.f32 %v654, %v657
    %vm659 = vweird.f32 %v653
    %vm660 = vweird.f32 %v654
    %vm661 = vmor %vm659, %vm660
    %v662 = vsel %vm661, %v654, %v658
    %v663 = vand.u32 2147483647, %v653
    %vm664 = vcmp.eq.f32.partialorder %v663, 8.507059e+37
    %v665 = vand.u32 %v653, 2147483648
    %v666 = vor.u32 1.1754944e-38, %v665
    %v667 = vsel %vm664, %v666, %v662
    %v668 = vmul.f32 %v643, %v667
    %v669 = vmin.f32 %v668, 1.0
    %v670 = vmax.f32 %v669, -1.0
    %v671 = vadd.f32 %v630, 1.0
    %v672 = vadd.f32 %v670, 1.0
    %v673 = vmul.f32 %v580, %v671
    %v674 = vmul.f32 %v581, %v672
    %v675 = vperm.slane %v49, 0
    %vm676 = vcmask 523264
    %v678 = vsel %vm676, %v673, 0
    %v681 = vsel %vm676, %v674, 0
    %683 = vmatpush.msra.mxu0 0.0
    %684 = vmatpush.msra.mxu0 0.0
    %685 = vmatpush.msra.mxu0 0.0
    %686 = vmatpush.msra.mxu0 0.0
    %687 = vmatpush.msra.mxu0 0.0
    %688 = vmatpush.msra.mxu0 0.0
    %689 = vmatpush.msra.mxu0 0.0
    %690 = vmatpush.msra.mxu0 0.0
    %691 = vmatpush.msra.mxu0 %v43
    %692 = vmatpush.msra.mxu0 %v42
    %693 = vmatpush.msra.mxu0 %v41
    %694 = vmatpush.msra.mxu0 %v40
    %695 = vmatpush.msra.mxu0 %v39
    %696 = vmatpush.msra.mxu0 %v38
    %697 = vmatpush.msra.mxu0 %v37
    %698 = vmatpush.msra.mxu0 %v36
    %699 = vmatmul.f32.gmra.mxu0 %v678
    %v700 = vpop.f32.mrf.mxu0
    %v701 = vadd.f32 %v675, %v700
    %702 = vmatmul.f32.gmra.mxu0 %v681
    %v703 = vpop.f32.mrf.mxu0
    %v704 = vadd.f32 %v675, %v703
    %705 = vdwg.mxu0
    %v706 = vadd.f32 %v701, %v548
    %v707 = vadd.f32 %v704, %v549
    %v708 = vsel %vm54, %v706, 0.0
    %709 = vadd.xlane.f32.xlu0 %v708
    %v710 = vpop.xlane.xlu0 %709
    %v711 = vsel %vm54, %v707, 0.0
    %712 = vadd.xlane.f32.xlu0 %v711
    %v713 = vpop.xlane.xlu0 %712
    %v714 = vmul.f32 %v710, %v505
    %v715 = vmul.f32 %v713, %v505
    %v716 = vsub.f32 %v706, %v714
    %v717 = vsub.f32 %v707, %v715
    %v718 = vmul.f32 %v716, %v716
    %v719 = vmul.f32 %v717, %v717
    %v720 = vsel %vm54, %v718, 0.0
    %721 = vadd.xlane.f32.xlu0 %v720
    %v722 = vpop.xlane.xlu0 %721
    %v723 = vsel %vm54, %v719, 0.0
    %724 = vadd.xlane.f32.xlu0 %v723
    %v725 = vpop.xlane.xlu0 %724
    %v726 = vmul.f32 %v722, %v505
    %v727 = vmul.f32 %v725, %v505
    %v728 = vadd.f32 %v726, 1e-12
    %v729 = vadd.f32 %v727, 1e-12
    %v730 = vrsqrt.pop %v728
    %v731 = vmul.f32 %v730, %v728
    %v732 = vmul.f32 %v731, %v730
    %v733 = vmul.f32 0.5, %v732
    %v734 = vsub.f32 1.5, %v733
    %v735 = vmul.f32 %v730, %v734
    %vm736 = vweird.f32 %v728
    %vm737 = vweird.f32 %v730
    %vm738 = vmor %vm736, %vm737
    %v739 = vsel %vm738, %v730, %v735
    %v740 = vrsqrt.pop %v729
    %v741 = vmul.f32 %v740, %v729
    %v742 = vmul.f32 %v741, %v740
    %v743 = vmul.f32 0.5, %v742
    %v744 = vsub.f32 1.5, %v743
    %v745 = vmul.f32 %v740, %v744
    %vm746 = vweird.f32 %v729
    %vm747 = vweird.f32 %v740
    %vm748 = vmor %vm746, %vm747
    %v749 = vsel %vm748, %v740, %v745
    %v750 = vmul.f32 %v716, %v739
    %v751 = vmul.f32 %v717, %v749
    %v752 = vperm.slane %v50, 0
    %v753 = vmul.f32 %v750, %v752
    %v754 = vmul.f32 %v751, %v752
    %v755 = vperm.slane %v51, 0
    %v756 = vadd.f32 %v753, %v755
    %v757 = vadd.f32 %v754, %v755
    %758 = vst.msk [vmem:[#allocation2] sm:$0xff] %vm54, %v756
    %759 = vst.msk [vmem:[#allocation2 + $0x8] sm:$0xff] %vm54, %v757
    // Predicated region
    $region10: #{trm_coatt.1} parent=1 // pred_check
      _
    $region11: #{trm_coatt.1} parent=1 // pred_check_branch
      %761 = sbr.rel (0) target = $region13
    $region12: #{trm_coatt.1} parent=1 // pred_region
      %763 = vsyncadd [#allocation3], 0
      %s764 = sshll.u32 [#allocation2], 4
      %s765 = int_to_ptr.vmem [resolvable:$true] %s764
      %s766 = sshll.u32 %s2, 4
      %s767 = int_to_ptr.hbm [resolvable:$true] %s766
      %772 = dma.vmem_to_hbm [thread:$0]  %s765, 256, %s767, [#allocation3], 128, 128, 8
    $region13: #{trm_coatt.1} parent=1 // pred_fallthru
      _
    // Predicated region
    $region14: #{trm_coatt.1} parent=1 // pred_check
      _
    $region15: #{trm_coatt.1} parent=1 // pred_check_branch
      %774 = sbr.rel (0) target = $region17
    $region16: #{trm_coatt.1} parent=1 // pred_region
      %776 = dma.done [#allocation3], 256
    $region17: #{trm_coatt.1} parent=1 // pred_fallthru
      _
    %777 = vsyncpa [#allocation3], 1

</llo_original>
